<compile_context>
chip_gen: v6e
topology: v6e:2x2x1
jax: 0.10.0
libtpu: 0.0.40
codegen_flags: <defaults>
</compile_context>

<pallas_src>
import functools

import jax
import jax.numpy as jnp
from jax.experimental import pallas as pl
from jax.experimental.pallas import tpu as pltpu


def _round_up(n, m):
    return ((n + m - 1) // m) * m


def _center_loss_kernel(x_ref, c_ref, out_ref, acc_ref, *,
                        num_classes, batch_size, tb):
    # x_ref:   (tb, D) f32  -- tb feature rows
    # c_ref:   (tb, D) f32  -- pre-gathered centers[labels] rows (same tiling)
    # out_ref: (1, 1)  f32  -- final scalar loss (resident across the grid)
    # acc_ref: (tb, 1) f32  -- per-row running clipped distances
    step = pl.program_id(0)

    @pl.when(step == 0)
    def _init():
        acc_ref[...] = jnp.zeros_like(acc_ref)

    x = x_ref[...]
    c = c_ref[...]
    d = x - c
    d2 = jnp.sum(d * d, axis=1, keepdims=True)          # (tb, 1), single reduce
    d2 = jnp.clip(d2, 1e-12, 1e12)
    # Zero the contribution of zero-padded rows beyond the true batch size.
    row = step * tb + jax.lax.broadcasted_iota(jnp.int32, (tb, 1), 0)
    acc_ref[...] += jnp.where(row < batch_size, d2, 0.0)

    @pl.when(step == pl.num_programs(0) - 1)
    def _finalize():
        # Every un-masked distmat entry contributes clamp(0,1e-12,1e12)=1e-12.
        unmasked = jnp.float32(float(batch_size) * float(num_classes - 1) * 1e-12)
        total = jnp.sum(acc_ref[...]) + unmasked
        out_ref[...] = jnp.reshape(total / jnp.float32(batch_size), (1, 1))


def center_loss(x, centers, labels, *, tb=256):
    """x: (B, D) f32, centers: (C, D) f32, labels: (B,) int -> scalar f32."""
    B, D = x.shape
    C, Dc = centers.shape
    assert D == Dc, "feature dims of x and centers must match"
    labels_i32 = labels.astype(jnp.int32)

    # Pre-gather the label rows of centers: one contiguous (B, D) array, so
    # the kernel sees two identically-tiled lane-dense streams.
    cg = jnp.take(centers, labels_i32, axis=0)

    # Tile size: multiple of 8 sublanes, capped at the batch; whole batch in
    # one grid step when it fits.
    tb = _round_up(min(tb, B), 8)
    Bp = _round_up(B, tb)
    if Bp != B:
        pad = ((0, Bp - B), (0, 0))
        x = jnp.pad(x, pad)
        cg = jnp.pad(cg, pad)
    num_steps = Bp // tb

    kernel = functools.partial(_center_loss_kernel,
                               num_classes=C, batch_size=B, tb=tb)

    out = pl.pallas_call(
        kernel,
        out_shape=jax.ShapeDtypeStruct((1, 1), jnp.float32),
        grid_spec=pltpu.PrefetchScalarGridSpec(
            num_scalar_prefetch=0,
            grid=(num_steps,),
            in_specs=[
                pl.BlockSpec((tb, D), lambda i: (i, 0)),   # x tile
                pl.BlockSpec((tb, D), lambda i: (i, 0)),   # gathered centers tile
            ],
            out_specs=pl.BlockSpec((1, 1), lambda i: (0, 0)),
            scratch_shapes=[pltpu.VMEM((tb, 1), jnp.float32)],
        ),
        compiler_params=pltpu.CompilerParams(
            dimension_semantics=("arbitrary",),   # carried accumulator
        ),
    )(x, cg)
    return out[0, 0]


def center_loss_ref(x, centers, labels):
    """Pure-JAX reference mirroring the PyTorch forward exactly."""
    B = x.shape[0]
    C = centers.shape[0]
    distmat = (
        jnp.sum(x * x, axis=1, keepdims=True)
        + jnp.sum(centers * centers, axis=1, keepdims=True).T
        - 2.0 * x @ centers.T
    )
    mask = (labels[:, None] == jnp.arange(C)[None, :]).astype(jnp.float32)
    dist = jnp.clip(distmat * mask, 1e-12, 1e12)
    return jnp.sum(dist) / B


if __name__ == "__main__":
    # Small synthetic shapes consistent with the module
    # (num_classes=751, feat_dim=2048 scaled down).
    key = jax.random.PRNGKey(0)
    kx, kc, kl, kx2, kl2 = jax.random.split(key, 5)

    # Case 1: small batch, single grid step.
    B, D, C = 8, 32, 128
    x = jax.random.normal(kx, (B, D), dtype=jnp.float32)
    centers = jax.random.normal(kc, (C, D), dtype=jnp.float32)
    labels = jax.random.randint(kl, (B,), 0, C, dtype=jnp.int32)

    loss = jax.block_until_ready(center_loss(x, centers, labels))
    ref = jax.block_until_ready(center_loss_ref(x, centers, labels))
    assert jnp.allclose(loss, ref, rtol=1e-5, atol=1e-5), (loss, ref)

    # Case 2: ragged batch with small tile -> multi-step accumulation + padding.
    B2 = 20
    x2 = jax.random.normal(kx2, (B2, D), dtype=jnp.float32)
    labels2 = jax.random.randint(kl2, (B2,), 0, C, dtype=jnp.int32)

    loss2 = jax.block_until_ready(center_loss(x2, centers, labels2, tb=8))
    ref2 = jax.block_until_ready(center_loss_ref(x2, centers, labels2))
    assert jnp.allclose(loss2, ref2, rtol=1e-5, atol=1e-5), (loss2, ref2)

    print("KERNEL_OK")
</pallas_src>

<mosaic_0001>
module attributes {stable_mosaic.version = 11 : i64} {
  func.func @_center_loss_kernel(%arg0: i32, %arg1: memref<8x32xf32, #tpu.memory_space<vmem>>, %arg2: memref<8x32xf32, #tpu.memory_space<vmem>>, %arg3: memref<1x1xf32, #tpu.memory_space<vmem>>, %arg4: memref<8x1xf32, #tpu.memory_space<vmem>>) attributes {dimension_semantics = [#tpu.dimension_semantics<arbitrary>], iteration_bounds = array<i64: 1>, scalar_prefetch = 0 : i64, scratch_operands = 1 : i64, tpu.core_type = #tpu.core_type<tc>, window_params = [{transform_indices = @transform_0, window_bounds = array<i64: 8, 32>}, {transform_indices = @transform_1, window_bounds = array<i64: 8, 32>}, {pipeline_mode = #tpu.pipeline_mode<synchronous>, transform_indices = @transform_2, window_bounds = array<i64: 1, 1>}]} {
    %c0_i32 = arith.constant 0 : i32
    %0 = arith.cmpi eq, %arg0, %c0_i32 : i32
    %1 = arith.extui %0 : i1 to i32
    %c0_i32_0 = arith.constant 0 : i32
    %2 = arith.cmpi ne, %1, %c0_i32_0 : i32
    scf.if %2 {
      %cst_14 = arith.constant 0.000000e+00 : f32
      %27 = vector.broadcast %cst_14 : f32 to vector<8x1xf32>
      %c0_15 = arith.constant 0 : index
      %c0_16 = arith.constant 0 : index
      %28 = vector.load %arg4[%c0_15, %c0_16] : memref<8x1xf32, #tpu.memory_space<vmem>>, vector<8x1xf32>
      tpu.vector_store %arg4[%c0_15, %c0_16], %27 {strides = array<i32>} : memref<8x1xf32, #tpu.memory_space<vmem>>, vector<8x1xf32>,
    } else {
    }
    %c0 = arith.constant 0 : index
    %c0_1 = arith.constant 0 : index
    %3 = vector.load %arg1[%c0, %c0_1] : memref<8x32xf32, #tpu.memory_space<vmem>>, vector<8x32xf32>
    %c0_2 = arith.constant 0 : index
    %c0_3 = arith.constant 0 : index
    %4 = vector.load %arg2[%c0_2, %c0_3] : memref<8x32xf32, #tpu.memory_space<vmem>>, vector<8x32xf32>
    %5 = arith.subf %3, %4 : vector<8x32xf32>
    %6 = arith.mulf %5, %5 : vector<8x32xf32>
    %cst = arith.constant dense<0.000000e+00> : vector<8xf32>
    %7 = vector.multi_reduction <add>, %6, %cst [1] : vector<8x32xf32> to vector<8xf32>
    %8 = vector.shape_cast %7 : vector<8xf32> to vector<8x1xf32>
    %cst_4 = arith.constant 9.99999996E-13 : f32
    %cst_5 = arith.constant 9.99999995E+11 : f32
    %9 = vector.broadcast %cst_4 : f32 to vector<8x1xf32>
    %10 = arith.maximumf %9, %8 : vector<8x1xf32>
    %11 = vector.broadcast %cst_5 : f32 to vector<8x1xf32>
    %12 = arith.minimumf %11, %10 : vector<8x1xf32>
    %c8_i32 = arith.constant 8 : i32
    %13 = arith.muli %arg0, %c8_i32 : i32
    %14 = tpu.iota {dimensions = array<i32: 0>} : vector<8x1xi32>
    %15 = vector.broadcast %13 : i32 to vector<8x1xi32>
    %16 = arith.addi %15, %14 : vector<8x1xi32>
    %c0_6 = arith.constant 0 : index
    %c0_7 = arith.constant 0 : index
    %17 = vector.load %arg4[%c0_6, %c0_7] : memref<8x1xf32, #tpu.memory_space<vmem>>, vector<8x1xf32>
    %c8_i32_8 = arith.constant 8 : i32
    %18 = vector.broadcast %c8_i32_8 : i32 to vector<8x1xi32>
    %19 = arith.cmpi slt, %16, %18 : vector<8x1xi32>
    %cst_9 = arith.constant 0.000000e+00 : f32
    %20 = vector.broadcast %cst_9 : f32 to vector<8x1xf32>
    %21 = arith.select %19, %12, %20 : vector<8x1xi1>, vector<8x1xf32>
    %22 = arith.addf %17, %21 : vector<8x1xf32>
    %c0_10 = arith.constant 0 : index
    %c0_11 = arith.constant 0 : index
    %23 = vector.load %arg4[%c0_10, %c0_11] : memref<8x1xf32, #tpu.memory_space<vmem>>, vector<8x1xf32>
    tpu.vector_store %arg4[%c0_10, %c0_11], %22 {strides = array<i32>} : memref<8x1xf32, #tpu.memory_space<vmem>>, vector<8x1xf32>,
    %c0_i32_12 = arith.constant 0 : i32
    %24 = arith.cmpi eq, %arg0, %c0_i32_12 : i32
    %25 = arith.extui %24 : i1 to i32
    %c0_i32_13 = arith.constant 0 : i32
    %26 = arith.cmpi ne, %25, %c0_i32_13 : i32
    scf.if %26 {
      %c0_14 = arith.constant 0 : index
      %c0_15 = arith.constant 0 : index
      %27 = vector.load %arg4[%c0_14, %c0_15] : memref<8x1xf32, #tpu.memory_space<vmem>>, vector<8x1xf32>
      %28 = vector.shape_cast %27 : vector<8x1xf32> to vector<1x8x1xf32>
      %cst_16 = arith.constant dense<0.000000e+00> : vector<1xf32>
      %29 = vector.multi_reduction <add>, %28, %cst_16 [1, 2] : vector<1x8x1xf32> to vector<1xf32>
      %30 = vector.shape_cast %29 : vector<1xf32> to vector<1x1x1xf32>
      %31 = vector.extract %30[0, 0, 0] : f32 from vector<1x1x1xf32>
      %cst_17 = arith.constant 1.016000e-09 : f32
      %32 = arith.addf %31, %cst_17 : f32
      %cst_18 = arith.constant 8.000000e+00 : f32
      %33 = arith.divf %32, %cst_18 : f32
      %34 = vector.broadcast %33 : f32 to vector<1x1xf32>
      %c0_19 = arith.constant 0 : index
      %c0_20 = arith.constant 0 : index
      %35 = vector.load %arg3[%c0_19, %c0_20] : memref<1x1xf32, #tpu.memory_space<vmem>>, vector<1x1xf32>
      tpu.vector_store %arg3[%c0_19, %c0_20], %34 {strides = array<i32>} : memref<1x1xf32, #tpu.memory_space<vmem>>, vector<1x1xf32>,
    } else {
    }
    return
  }
  func.func @transform_0(%arg0: i32) -> (i32, i32) {
    %c0_i32 = arith.constant 0 : i32
    %c0_i32_0 = arith.constant 0 : i32
    return %arg0, %c0_i32 : i32, i32
  }
  func.func @transform_1(%arg0: i32) -> (i32, i32) {
    %c0_i32 = arith.constant 0 : i32
    %c0_i32_0 = arith.constant 0 : i32
    return %arg0, %c0_i32 : i32, i32
  }
  func.func @transform_2(%arg0: i32) -> (i32, i32) {
    %c0_i32 = arith.constant 0 : i32
    %c0_i32_0 = arith.constant 0 : i32
    %c0_i32_1 = arith.constant 0 : i32
    return %c0_i32, %c0_i32_0 : i32, i32
  }
}

</mosaic_0001>

<llo_original>
// kernel: tpu_custom_call.1
$region0: #{tpu_custom_call.1}
  #allocation0 [shape = 'u32[]', space=smem, size = 0x4, offset = 0x4, fixed_abs, tag = 'smem constant byte address 0x4 - core index']
  #allocation1 [shape = 'u32[144,128]{1,0:T(1,128)}', space=vmem, size = 0x12000, scoped, tag = 'internal scratch']
  #allocation2 [shape = 'f32[8,1]{1,0:T(8,128)}', space=vmem, size = 0x1000, scoped, tag = 'scratch operand']
  %s0 = inlined_call_operand.hbm [shape: f32[8,32], index: 0, kind: input, shape index: {}]
  %s1 = inlined_call_operand.hbm [shape: f32[8,32], index: 1, kind: input, shape index: {}]
  %s2 = inlined_call_operand.hbm [shape: f32[1,1], index: 2, kind: output, shape index: {}]
  %s3 = sld [smem:[#allocation0]]
  $region34: #{tpu_custom_call.1} parent=0
    _
  %s5 = ssub.s32 1, %s3
  %s6 = scalar_select 0, %s5, %s3
  $region1: #{tpu_custom_call.1} parent=0
    #allocation3 [shape = 'u8[4096]{0}', space=vmem, size = 0x1000, scoped, tag = 'input window, operand 0, single buffered']
    #allocation4 [shape = 's32[1]{0}', space=sflag, size = 0x4, scoped, tag = 'scoped memory for tpu_custom_call.1']
    #allocation5 [shape = 's32[1]{0}', space=sflag, size = 0x4, scoped, tag = 'scoped memory for tpu_custom_call.1']
    #allocation6 [shape = 'u8[4096]{0}', space=vmem, size = 0x1000, scoped, tag = 'input window, operand 1, single buffered']
    #allocation7 [shape = 's32[1]{0}', space=sflag, size = 0x4, scoped, tag = 'scoped memory for tpu_custom_call.1']
    #allocation8 [shape = 'u8[512]{0}', space=vmem, size = 0x400, scoped, tag = 'output window, operand 0, single buffered']
    %7 = vsyncpa [#allocation4], 0
    %8 = vsyncpa [#allocation7], 0
    %9 = vsyncpa [#allocation5], 0
    // Predicated region
    $region2: #{tpu_custom_call.1} parent=1 // pred_check
      _
    $region3: #{tpu_custom_call.1} parent=1 // pred_check_branch
      %11 = sbr.rel (0) target = $region5
    $region4: #{tpu_custom_call.1} parent=1 // pred_region
      %s13 = ssub.s32 128, 128
      %14 = vsyncadd [#allocation4], %s13
      %s16 = sshll.u32 [#allocation3], 4
      %s17 = int_to_ptr.vmem [resolvable:$true] %s16
      %19 = dma.hbm_to_vmem [thread:$0]  %s0, 128, %s17, [#allocation4]
    $region5: #{tpu_custom_call.1} parent=1 // pred_fallthru
      _
    // Predicated region
    $region6: #{tpu_custom_call.1} parent=1 // pred_check
      _
    $region7: #{tpu_custom_call.1} parent=1 // pred_check_branch
      %21 = sbr.rel (0) target = $region9
    $region8: #{tpu_custom_call.1} parent=1 // pred_region
      %s23 = ssub.s32 128, 128
      %24 = vsyncadd [#allocation7], %s23
      %s26 = sshll.u32 [#allocation6], 4
      %s27 = int_to_ptr.vmem [resolvable:$true] %s26
      %29 = dma.hbm_to_vmem [thread:$0]  %s1, 128, %s27, [#allocation7]
    $region9: #{tpu_custom_call.1} parent=1 // pred_fallthru
      _
    // Predicated region
    $region10: #{tpu_custom_call.1} parent=1 // pred_check
      _
    $region11: #{tpu_custom_call.1} parent=1 // pred_check_branch
      %31 = sbr.rel (0) target = $region13
    $region12: #{tpu_custom_call.1} parent=1 // pred_region
      %32 = dma.done [#allocation4], 128
    $region13: #{tpu_custom_call.1} parent=1 // pred_fallthru
      _
    // Predicated region
    $region14: #{tpu_custom_call.1} parent=1 // pred_check
      _
    $region15: #{tpu_custom_call.1} parent=1 // pred_check_branch
      %34 = sbr.rel (0) target = $region17
    $region16: #{tpu_custom_call.1} parent=1 // pred_region
      %35 = dma.done [#allocation7], 128
    $region17: #{tpu_custom_call.1} parent=1 // pred_fallthru
      _
    %p36 = scmp.eq.s32.totalorder 0, 0
    // Predicated region
    $region18: #{tpu_custom_call.1} parent=1 // pred_check
      %p37 = pneg %p36
    $region19: #{tpu_custom_call.1} parent=1 // pred_check_branch
      %39 = sbr.rel (%p37) target = $region21
    $region20: #{tpu_custom_call.1} parent=1 // pred_region
      %vm40 = vcmask 7168
      %41 = vst.msk [vmem:[#allocation2] sm:$0xff] %vm40, 0.0
    $region21: #{tpu_custom_call.1} parent=1 // pred_fallthru
      _
    %v42 = vld [vmem:[#allocation3] sm:$0xff]
    %v43 = vld [vmem:[#allocation6] sm:$0xff]
    %v44 = vsub.f32 %v42, %v43
    %v45 = vmul.f32 %v44, %v44
    %vm46 = vcmask 261120
    %v47 = vsel %vm46, %v45, 0.0
    %48 = vadd.xlane.f32.xlu0 %v47
    %v49 = vpop.xlane.xlu0 %48
    %v50 = vmax.f32 %v49, 1e-12
    %v51 = vmin.f32 %v50, 1e+12
    %s52 = smul.u32 0, 8
    %v53 = vlaneseq
    %v54 = vshrl.u32 %v53, 7
    %v55 = vstv %s52
    %v56 = vadd.s32 %v55, %v54
    %v57 = vld [vmem:[#allocation2] sm:$0xff]
    %vm58 = vcmp.lt.s32.totalorder %v56, 8
    %v59 = vsel %vm58, %v51, 0.0
    %v60 = vadd.f32 %v57, %v59
    %vm61 = vcmask 7168
    %62 = vst.msk [vmem:[#allocation2] sm:$0xff] %vm61, %v60
    // Predicated region
    $region22: #{tpu_custom_call.1} parent=1 // pred_check
      %p63 = pneg %p36
    $region23: #{tpu_custom_call.1} parent=1 // pred_check_branch
      %65 = sbr.rel (%p63) target = $region25
    $region24: #{tpu_custom_call.1} parent=1 // pred_region
      %v66 = vld [vmem:[#allocation2] sm:$0xff]
      %v67 = vsel %vm61, %v66, 0.0
      %68 = vadd.xlane.f32.xlu0 %v67
      %v69 = vpop.xlane.xlu0 %68
      %v70 = vrot.slane %v69, 4
      %v71 = vadd.f32 %v69, %v70
      %v72 = vrot.slane %v71, 2
      %v73 = vadd.f32 %v71, %v72
      %v74 = vrot.slane %v73, 1
      %v75 = vadd.f32 %v73, %v74
      %s76 = vtos %v75
      %s77 = sadd.f32 %s76, 1.016e-09
      %v78 = vrcp.pop 8.0
      %s79 = vtos %v78
      %s80 = smul.f32 %s77, %s79
      %v81 = vstv %s80
      %vm82 = vcmask 0
      %83 = vst.msk [vmem:[#allocation8] sm:$0x1] %vm82, %v81
    $region25: #{tpu_custom_call.1} parent=1 // pred_fallthru
      _
    // Predicated region
    $region26: #{tpu_custom_call.1} parent=1 // pred_check
      _
    $region27: #{tpu_custom_call.1} parent=1 // pred_check_branch
      %85 = sbr.rel (0) target = $region29
    $region28: #{tpu_custom_call.1} parent=1 // pred_region
      %s87 = ssub.s32 16, 16
      %88 = vsyncadd [#allocation5], %s87
      %s90 = sshll.u32 [#allocation8], 4
      %s91 = int_to_ptr.vmem [resolvable:$true] %s90
      %93 = dma.vmem_to_hbm [thread:$0]  %s91, 16, %s2, [#allocation5]
    $region29: #{tpu_custom_call.1} parent=1 // pred_fallthru
      _
    // Predicated region
    $region30: #{tpu_custom_call.1} parent=1 // pred_check
      _
    $region31: #{tpu_custom_call.1} parent=1 // pred_check_branch
      %95 = sbr.rel (0) target = $region33
    $region32: #{tpu_custom_call.1} parent=1 // pred_region
      %96 = dma.done [#allocation5], 16
    $region33: #{tpu_custom_call.1} parent=1 // pred_fallthru
      _
    %97 = vsyncpa [#allocation4], 1
    %98 = vsyncpa [#allocation7], 1
    %99 = vsyncpa [#allocation5], 1

</llo_original>
